<compile_context>
chip_gen: v6e
topology: v6e:2x2x1
jax: 0.10.0
libtpu: 0.0.40
codegen_flags: <defaults>
</compile_context>

<pallas_src>
import functools

import jax
import jax.numpy as jnp
from jax import lax
from jax.experimental import pallas as pl
from jax.experimental.pallas import tpu as pltpu

LN_EPS = 1e-5  # nn.LayerNorm default


def _row_tile(n: int) -> int:
    # Full block for small n; 512-row tiles (multiple of 8, MXU friendly) for large n so
    # the moving x/out DMAs double-buffer behind the MXU while weights stay resident.
    # TODO(synk): tune per generation (v6e can take 1024; v5e prefers 256).
    return n if n <= 512 else 512


def _ffn_tile(f: int) -> int:
    # Largest "nice" divisor of f so no partial block lands on the ffn contraction axis.
    for cand in (1024, 512, 256, 128):
        if f >= cand and f % cand == 0:
            return cand
    return f


def _compiler_params(semantics, block_bytes):
    # Explicit scoped-VMEM limit derived from the (double-buffered) block footprint,
    # clamped to [32 MiB, 64 MiB] so it is legal on v5e/v6e (128 MiB) and v7x (64 MiB).
    est = 2 * int(block_bytes) + (2 << 20)
    limit = int(min(64 * 1024 * 1024, max(32 * 1024 * 1024, est)))
    return pltpu.CompilerParams(dimension_semantics=semantics, vmem_limit_bytes=limit)


# --------------------------------------------------------------------------- #
# Kernel 1: LayerNorm + Linear (Q projection)
# --------------------------------------------------------------------------- #
def _ln_linear_kernel(x_ref, g_ref, beta_ref, w_ref, b_ref, o_ref, *, eps):
    x = x_ref[...].astype(jnp.float32)
    mu = jnp.mean(x, axis=-1, keepdims=True)
    var = jnp.mean(jnp.square(x - mu), axis=-1, keepdims=True)
    xn = (x - mu) * lax.rsqrt(var + eps)
    xn = xn * g_ref[...].astype(jnp.float32) + beta_ref[...].astype(jnp.float32)
    y = jnp.dot(xn.astype(w_ref.dtype), w_ref[...], preferred_element_type=jnp.float32)
    o_ref[...] = (y + b_ref[...].astype(jnp.float32)).astype(o_ref.dtype)


def ln_linear(x2d, gamma, beta, w, b, *, eps=LN_EPS):
    n, h = x2d.shape
    f = w.shape[-1]
    tm = _row_tile(n)
    itm = x2d.dtype.itemsize
    wit = w.dtype.itemsize
    blk = itm * (tm * h + 2 * h + tm * f) + wit * (h * f + f)
    cost = pl.CostEstimate(
        flops=2 * n * h * f,
        transcendentals=0,
        bytes_accessed=itm * (n * h + n * f + 2 * h) + wit * (h * f + f),
    )
    return pl.pallas_call(
        functools.partial(_ln_linear_kernel, eps=eps),
        out_shape=jax.ShapeDtypeStruct((n, f), x2d.dtype),
        grid_spec=pltpu.PrefetchScalarGridSpec(
            num_scalar_prefetch=0,
            grid=(pl.cdiv(n, tm),),
            in_specs=[
                pl.BlockSpec((tm, h), lambda i: (i, 0)),   # x tile moves with grid
                pl.BlockSpec((1, h), lambda i: (0, 0)),    # gamma resident
                pl.BlockSpec((1, h), lambda i: (0, 0)),    # beta  resident
                pl.BlockSpec((h, f), lambda i: (0, 0)),    # W     resident
                pl.BlockSpec((1, f), lambda i: (0, 0)),    # b     resident
            ],
            out_specs=pl.BlockSpec((tm, f), lambda i: (i, 0)),
        ),
        compiler_params=_compiler_params(("parallel",), blk),
        cost_estimate=cost,
    )(x2d, gamma.reshape(1, h), beta.reshape(1, h), w, b.reshape(1, f))


# --------------------------------------------------------------------------- #
# Kernel 2: LayerNorm + two Linears (K and V projections share one LN / one x read)
# --------------------------------------------------------------------------- #
def _ln_linear_kv_kernel(x_ref, g_ref, beta_ref, wk_ref, bk_ref, wv_ref, bv_ref,
                         k_ref, v_ref, *, eps):
    x = x_ref[...].astype(jnp.float32)
    mu = jnp.mean(x, axis=-1, keepdims=True)
    var = jnp.mean(jnp.square(x - mu), axis=-1, keepdims=True)
    xn = (x - mu) * lax.rsqrt(var + eps)
    xn = xn * g_ref[...].astype(jnp.float32) + beta_ref[...].astype(jnp.float32)
    xn_c = xn.astype(wk_ref.dtype)
    kp = jnp.dot(xn_c, wk_ref[...], preferred_element_type=jnp.float32)
    vp = jnp.dot(xn_c, wv_ref[...], preferred_element_type=jnp.float32)
    k_ref[...] = (kp + bk_ref[...].astype(jnp.float32)).astype(k_ref.dtype)
    v_ref[...] = (vp + bv_ref[...].astype(jnp.float32)).astype(v_ref.dtype)


def ln_linear_kv(x2d, gamma, beta, wk, bk, wv, bv, *, eps=LN_EPS):
    n, h = x2d.shape
    f = wk.shape[-1]
    tm = _row_tile(n)
    itm = x2d.dtype.itemsize
    wit = wk.dtype.itemsize
    blk = itm * (tm * h + 2 * h + 2 * tm * f) + wit * 2 * (h * f + f)
    cost = pl.CostEstimate(
        flops=4 * n * h * f,
        transcendentals=0,
        bytes_accessed=itm * (n * h + 2 * n * f + 2 * h) + wit * 2 * (h * f + f),
    )
    return pl.pallas_call(
        functools.partial(_ln_linear_kv_kernel, eps=eps),
        out_shape=(jax.ShapeDtypeStruct((n, f), x2d.dtype),
                   jax.ShapeDtypeStruct((n, f), x2d.dtype)),
        grid_spec=pltpu.PrefetchScalarGridSpec(
            num_scalar_prefetch=0,
            grid=(pl.cdiv(n, tm),),
            in_specs=[
                pl.BlockSpec((tm, h), lambda i: (i, 0)),   # kv tile moves with grid
                pl.BlockSpec((1, h), lambda i: (0, 0)),
                pl.BlockSpec((1, h), lambda i: (0, 0)),
                pl.BlockSpec((h, f), lambda i: (0, 0)),    # Wk resident
                pl.BlockSpec((1, f), lambda i: (0, 0)),
                pl.BlockSpec((h, f), lambda i: (0, 0)),    # Wv resident
                pl.BlockSpec((1, f), lambda i: (0, 0)),
            ],
            out_specs=(pl.BlockSpec((tm, f), lambda i: (i, 0)),
                       pl.BlockSpec((tm, f), lambda i: (i, 0))),
        ),
        compiler_params=_compiler_params(("parallel",), blk),
        cost_estimate=cost,
    )(x2d, gamma.reshape(1, h), beta.reshape(1, h),
      wk, bk.reshape(1, f), wv, bv.reshape(1, f))


# --------------------------------------------------------------------------- #
# Kernel 3: attention core — one batch element per grid step, all heads in-kernel,
#           q/k/v in natural [B, S, hidden] layout (no wrapper transposes).
# --------------------------------------------------------------------------- #
def _attn_body(q_ref, k_ref, v_ref, bias_ref, ctx_ref, att_ref, *, scale, num_heads):
    hid = q_ref.shape[-1]
    d = hid // num_heads
    q = q_ref[0].astype(jnp.float32) * scale
    k = k_ref[0].astype(jnp.float32)
    v = v_ref[0].astype(jnp.float32)
    ctx_parts = []
    for hh in range(num_heads):
        lo = hh * d
        qh = q[:, lo:lo + d]
        kh = k[:, lo:lo + d]
        vh = v[:, lo:lo + d]
        # contract last dims: (s, d) x (skv, d) -> (s, skv); no explicit K transpose
        sc = lax.dot_general(qh, kh, dimension_numbers=(((1,), (1,)), ((), ())),
                             preferred_element_type=jnp.float32)
        if bias_ref is not None:
            sc = sc + bias_ref[0, hh].astype(jnp.float32)
        m = jnp.max(sc, axis=-1, keepdims=True)
        p = jnp.exp(sc - m)
        att = p / jnp.sum(p, axis=-1, keepdims=True)
        ctx_parts.append(jnp.dot(att, vh, preferred_element_type=jnp.float32))
        att_ref[0, hh] = att.astype(att_ref.dtype)
    # single lane-dense store of the per-head contexts back into [B, S, hidden] layout
    ctx_ref[0] = jnp.concatenate(ctx_parts, axis=-1).astype(ctx_ref.dtype)


def _attn_kernel_bias(q_ref, k_ref, v_ref, bias_ref, ctx_ref, att_ref, *, scale, num_heads):
    _attn_body(q_ref, k_ref, v_ref, bias_ref, ctx_ref, att_ref,
               scale=scale, num_heads=num_heads)


def _attn_kernel_nobias(q_ref, k_ref, v_ref, ctx_ref, att_ref, *, scale, num_heads):
    _attn_body(q_ref, k_ref, v_ref, None, ctx_ref, att_ref,
               scale=scale, num_heads=num_heads)


def attention(q, k, v, bias, *, scale, num_heads):
    b, s, hid = q.shape
    skv = k.shape[1]
    d = hid // num_heads
    itm = q.dtype.itemsize

    blk = itm * (2 * s * hid + 2 * skv * hid) + itm * num_heads * s * skv
    bytes_acc = itm * b * (2 * s * hid + 2 * skv * hid) + itm * b * num_heads * s * skv
    if bias is not None:
        blk += bias.dtype.itemsize * num_heads * s * skv
        bytes_acc += bias.dtype.itemsize * b * num_heads * s * skv
    cost = pl.CostEstimate(
        flops=4 * b * num_heads * s * skv * d,
        transcendentals=b * num_heads * s * skv,
        bytes_accessed=bytes_acc,
    )

    in_specs = [
        pl.BlockSpec((1, s, hid), lambda i: (i, 0, 0)),
        pl.BlockSpec((1, skv, hid), lambda i: (i, 0, 0)),
        pl.BlockSpec((1, skv, hid), lambda i: (i, 0, 0)),
    ]
    args = [q, k, v]
    if bias is not None:
        in_specs.append(pl.BlockSpec((1, num_heads, s, skv), lambda i: (i, 0, 0, 0)))
        args.append(bias)
        kernel = functools.partial(_attn_kernel_bias, scale=scale, num_heads=num_heads)
    else:
        kernel = functools.partial(_attn_kernel_nobias, scale=scale, num_heads=num_heads)

    return pl.pallas_call(
        kernel,
        out_shape=(
            jax.ShapeDtypeStruct((b, s, hid), q.dtype),
            jax.ShapeDtypeStruct((b, num_heads, s, skv), q.dtype),  # att in input dtype
        ),
        grid_spec=pltpu.PrefetchScalarGridSpec(
            num_scalar_prefetch=0,
            grid=(b,),
            in_specs=in_specs,
            out_specs=(
                pl.BlockSpec((1, s, hid), lambda i: (i, 0, 0)),
                pl.BlockSpec((1, num_heads, s, skv), lambda i: (i, 0, 0, 0)),
            ),
        ),
        compiler_params=_compiler_params(("parallel",), blk),
        cost_estimate=cost,
    )(*args)


# --------------------------------------------------------------------------- #
# Kernel 4: Linear + bias + residual (attention output projection)
# --------------------------------------------------------------------------- #
def _linear_residual_kernel(x_ref, w_ref, b_ref, r_ref, o_ref):
    y = jnp.dot(x_ref[...].astype(w_ref.dtype), w_ref[...],
                preferred_element_type=jnp.float32)
    y = y + b_ref[...].astype(jnp.float32) + r_ref[...].astype(jnp.float32)
    o_ref[...] = y.astype(o_ref.dtype)


def linear_residual(x2d, w, b, resid2d):
    n, f_in = x2d.shape
    f_out = w.shape[-1]
    tm = _row_tile(n)
    itm = x2d.dtype.itemsize
    wit = w.dtype.itemsize
    blk = itm * (tm * f_in + 2 * tm * f_out) + wit * (f_in * f_out + f_out)
    cost = pl.CostEstimate(
        flops=2 * n * f_in * f_out,
        transcendentals=0,
        bytes_accessed=itm * (n * f_in + 2 * n * f_out) + wit * (f_in * f_out + f_out),
    )
    return pl.pallas_call(
        _linear_residual_kernel,
        out_shape=jax.ShapeDtypeStruct((n, f_out), x2d.dtype),
        grid_spec=pltpu.PrefetchScalarGridSpec(
            num_scalar_prefetch=0,
            grid=(pl.cdiv(n, tm),),
            in_specs=[
                pl.BlockSpec((tm, f_in), lambda i: (i, 0)),
                pl.BlockSpec((f_in, f_out), lambda i: (0, 0)),   # W resident
                pl.BlockSpec((1, f_out), lambda i: (0, 0)),
                pl.BlockSpec((tm, f_out), lambda i: (i, 0)),     # residual tile
            ],
            out_specs=pl.BlockSpec((tm, f_out), lambda i: (i, 0)),
        ),
        compiler_params=_compiler_params(("parallel",), blk),
        cost_estimate=cost,
    )(x2d, w, b.reshape(1, f_out), resid2d)


# --------------------------------------------------------------------------- #
# Kernel 5: LayerNorm + FFN (Linear -> ReLU -> Linear) + residual.
#           ffn axis is a reduction grid dim ("arbitrary") with a fp32 accumulator,
#           so only W1[:, tile] / W2[tile, :] slices are resident (v7x safe).
# --------------------------------------------------------------------------- #
def _ln_ffn_residual_kernel(x_ref, g_ref, beta_ref, w1_ref, b1_ref, w2_ref, b2_ref,
                            o_ref, xn_ref, acc_ref, *, eps):
    j = pl.program_id(1)

    @pl.when(j == 0)
    def _():
        x = x_ref[...].astype(jnp.float32)
        mu = jnp.mean(x, axis=-1, keepdims=True)
        var = jnp.mean(jnp.square(x - mu), axis=-1, keepdims=True)
        xn = (x - mu) * lax.rsqrt(var + eps)
        xn_ref[...] = (xn * g_ref[...].astype(jnp.float32)
                       + beta_ref[...].astype(jnp.float32))
        acc_ref[...] = jnp.zeros_like(acc_ref)

    hcur = jnp.dot(xn_ref[...].astype(w1_ref.dtype), w1_ref[...],
                   preferred_element_type=jnp.float32)
    hcur = jnp.maximum(hcur + b1_ref[...].astype(jnp.float32), 0.0)  # module's "gelu" is nn.ReLU
    acc_ref[...] += jnp.dot(hcur.astype(w2_ref.dtype), w2_ref[...],
                            preferred_element_type=jnp.float32)

    @pl.when(j == pl.num_programs(1) - 1)
    def _():
        y = acc_ref[...] + b2_ref[...].astype(jnp.float32) + x_ref[...].astype(jnp.float32)
        o_ref[...] = y.astype(o_ref.dtype)   # residual from the raw (pre-LN) x tile


def ln_ffn_residual(x2d, gamma, beta, w1, b1, w2, b2, *, eps=LN_EPS):
    n, h = x2d.shape
    f = w1.shape[-1]
    tm = _row_tile(n)
    tf = _ffn_tile(f)
    itm = x2d.dtype.itemsize
    wit = w1.dtype.itemsize
    blk = (itm * (2 * tm * h + 3 * h) + wit * (2 * h * tf + tf + h)
           + 4 * 2 * tm * h)  # fp32 xn + acc scratch
    cost = pl.CostEstimate(
        flops=4 * n * h * f,
        transcendentals=0,
        bytes_accessed=itm * (2 * n * h + 3 * h) + wit * (2 * h * f + f + h),
    )
    return pl.pallas_call(
        functools.partial(_ln_ffn_residual_kernel, eps=eps),
        out_shape=jax.ShapeDtypeStruct((n, h), x2d.dtype),
        grid_spec=pltpu.PrefetchScalarGridSpec(
            num_scalar_prefetch=0,
            grid=(pl.cdiv(n, tm), pl.cdiv(f, tf)),
            in_specs=[
                pl.BlockSpec((tm, h), lambda i, j: (i, 0)),   # raw x (LN + residual)
                pl.BlockSpec((1, h), lambda i, j: (0, 0)),
                pl.BlockSpec((1, h), lambda i, j: (0, 0)),
                pl.BlockSpec((h, tf), lambda i, j: (0, j)),   # W1 column slice
                pl.BlockSpec((1, tf), lambda i, j: (0, j)),
                pl.BlockSpec((tf, h), lambda i, j: (j, 0)),   # W2 row slice
                pl.BlockSpec((1, h), lambda i, j: (0, 0)),
            ],
            out_specs=pl.BlockSpec((tm, h), lambda i, j: (i, 0)),
            scratch_shapes=[pltpu.VMEM((tm, h), jnp.float32),   # cached post-LN activ.
                            pltpu.VMEM((tm, h), jnp.float32)],  # fp32 accumulator
        ),
        compiler_params=_compiler_params(("parallel", "arbitrary"), blk),
        cost_estimate=cost,
    )(x2d, gamma.reshape(1, h), beta.reshape(1, h), w1, b1.reshape(1, f),
      w2, b2.reshape(1, h))


# --------------------------------------------------------------------------- #
# EncoderLayer forward
# --------------------------------------------------------------------------- #
def encoder_layer(x, kv, params, attn_bias=None):
    """x, kv: [B, S, hidden]. Returns (out [B, S, hidden], att [B, heads, S, S_kv])."""
    b, s, hdim = x.shape
    skv = kv.shape[1]
    nh = params["num_heads"]
    assert hdim % nh == 0
    d = hdim // nh
    scale = d ** (-0.5)

    x2d = x.reshape(b * s, hdim)
    kv2d = kv.reshape(b * skv, hdim)

    # self_attention_norm fused into the projections; K/V share one LN pass.
    q2d = ln_linear(x2d, params["ln1_g"], params["ln1_b"], params["wq"], params["bq"])
    k2d, v2d = ln_linear_kv(kv2d, params["ln1_g"], params["ln1_b"],
                            params["wk"], params["bk"], params["wv"], params["bv"])

    # Only free (metadata) reshapes — no head transposes in the wrapper.
    q3 = q2d.reshape(b, s, hdim)
    k3 = k2d.reshape(b, skv, hdim)
    v3 = v2d.reshape(b, skv, hdim)

    bias = None
    if attn_bias is not None:
        bias = jnp.broadcast_to(attn_bias, (b, nh, s, skv))

    ctx, att = attention(q3, k3, v3, bias, scale=scale, num_heads=nh)

    # output_layer + first residual
    x1 = linear_residual(ctx.reshape(b * s, hdim), params["wo"], params["bo"], x2d)

    # ffn_norm + FFN + second residual (fused, ffn axis tiled)
    out = ln_ffn_residual(x1, params["ln2_g"], params["ln2_b"],
                          params["w1"], params["b1"], params["w2"], params["b2"])

    return out.reshape(b, s, hdim), att


# --------------------------------------------------------------------------- #
# Pure-JAX reference (mirrors the PyTorch module in eval mode)
# --------------------------------------------------------------------------- #
def _reference(x, kv, params, attn_bias):
    def ln(z, g, bb):
        mu = jnp.mean(z, -1, keepdims=True)
        var = jnp.mean((z - mu) ** 2, -1, keepdims=True)
        return (z - mu) / jnp.sqrt(var + LN_EPS) * g + bb

    b, s, hdim = x.shape
    nh = params["num_heads"]
    d = hdim // nh
    y = ln(x, params["ln1_g"], params["ln1_b"])
    kvn = ln(kv, params["ln1_g"], params["ln1_b"])
    q = (y @ params["wq"] + params["bq"]).reshape(b, s, nh, d).transpose(0, 2, 1, 3)
    k = (kvn @ params["wk"] + params["bk"]).reshape(b, -1, nh, d).transpose(0, 2, 1, 3)
    v = (kvn @ params["wv"] + params["bv"]).reshape(b, -1, nh, d).transpose(0, 2, 1, 3)
    sc = (q * d ** (-0.5)) @ jnp.swapaxes(k, -1, -2)
    if attn_bias is not None:
        sc = sc + attn_bias
    att = jax.nn.softmax(sc, axis=-1)
    ctx = (att @ v).transpose(0, 2, 1, 3).reshape(b, s, hdim)
    x1 = x + (ctx @ params["wo"] + params["bo"])
    y2 = ln(x1, params["ln2_g"], params["ln2_b"])
    ffn = jnp.maximum(y2 @ params["w1"] + params["b1"], 0.0) @ params["w2"] + params["b2"]
    return x1 + ffn, att


if __name__ == "__main__":
    batch, seq, hidden, ffn, heads = 2, 8, 32, 64, 4

    key = jax.random.PRNGKey(0)
    keys = jax.random.split(key, 16)

    def lin_init(kw, kb, fan_in, fan_out):
        bound = 1.0 / (fan_in ** 0.5)
        w = jax.random.uniform(kw, (fan_in, fan_out), minval=-bound, maxval=bound,
                               dtype=jnp.float32)
        bb = jax.random.uniform(kb, (fan_out,), minval=-bound, maxval=bound,
                                dtype=jnp.float32)
        return w, bb

    wq, bq = lin_init(keys[0], keys[1], hidden, hidden)
    wk, bk = lin_init(keys[2], keys[3], hidden, hidden)
    wv, bv = lin_init(keys[4], keys[5], hidden, hidden)
    wo, bo = lin_init(keys[6], keys[7], hidden, hidden)
    w1, b1 = lin_init(keys[8], keys[9], hidden, ffn)
    w2, b2 = lin_init(keys[10], keys[11], ffn, hidden)

    params = dict(
        num_heads=heads,
        ln1_g=jnp.ones((hidden,), jnp.float32), ln1_b=jnp.zeros((hidden,), jnp.float32),
        ln2_g=jnp.ones((hidden,), jnp.float32), ln2_b=jnp.zeros((hidden,), jnp.float32),
        wq=wq, bq=bq, wk=wk, bk=bk, wv=wv, bv=bv, wo=wo, bo=bo,
        w1=w1, b1=b1, w2=w2, b2=b2,
    )

    x = jax.random.normal(keys[12], (batch, seq, hidden), dtype=jnp.float32)
    kv = jax.random.normal(keys[13], (batch, seq, hidden), dtype=jnp.float32)
    attn_bias = 0.1 * jax.random.normal(keys[14], (batch, heads, seq, seq),
                                        dtype=jnp.float32)

    # With attention bias
    out, att = encoder_layer(x, kv, params, attn_bias)
    jax.block_until_ready((out, att))
    ref_out, ref_att = _reference(x, kv, params, attn_bias)
    assert out.shape == (batch, seq, hidden)
    assert att.shape == (batch, heads, seq, seq)
    assert jnp.allclose(out, ref_out, atol=1e-4, rtol=1e-4)
    assert jnp.allclose(att, ref_att, atol=1e-4, rtol=1e-4)

    # Bias-free variant (no zero bias materialized)
    out0, att0 = encoder_layer(x, kv, params, None)
    jax.block_until_ready((out0, att0))
    ref_out0, ref_att0 = _reference(x, kv, params, None)
    assert jnp.allclose(out0, ref_out0, atol=1e-4, rtol=1e-4)
    assert jnp.allclose(att0, ref_att0, atol=1e-4, rtol=1e-4)

    print("KERNEL_OK")
</pallas_src>

<mosaic_0001>
module attributes {stable_mosaic.version = 11 : i64} {
  func.func @_ln_linear_kernel(%arg0: i32, %arg1: memref<16x32xf32, #tpu.memory_space<vmem>>, %arg2: memref<1x32xf32, #tpu.memory_space<vmem>>, %arg3: memref<1x32xf32, #tpu.memory_space<vmem>>, %arg4: memref<32x32xf32, #tpu.memory_space<vmem>>, %arg5: memref<1x32xf32, #tpu.memory_space<vmem>>, %arg6: memref<16x32xf32, #tpu.memory_space<vmem>>) attributes {dimension_semantics = [#tpu.dimension_semantics<parallel>], iteration_bounds = array<i64: 1>, scalar_prefetch = 0 : i64, scratch_operands = 0 : i64, tpu.core_type = #tpu.core_type<tc>, window_params = [{transform_indices = @transform_0, window_bounds = array<i64: 16, 32>}, {pipeline_mode = #tpu.pipeline_mode<synchronous>, transform_indices = @transform_1, window_bounds = array<i64: 1, 32>}, {pipeline_mode = #tpu.pipeline_mode<synchronous>, transform_indices = @transform_2, window_bounds = array<i64: 1, 32>}, {pipeline_mode = #tpu.pipeline_mode<synchronous>, transform_indices = @transform_3, window_bounds = array<i64: 32, 32>}, {pipeline_mode = #tpu.pipeline_mode<synchronous>, transform_indices = @transform_4, window_bounds = array<i64: 1, 32>}, {transform_indices = @transform_5, window_bounds = array<i64: 16, 32>}]} {
    %c0 = arith.constant 0 : index
    %c0_0 = arith.constant 0 : index
    %0 = vector.load %arg1[%c0, %c0_0] : memref<16x32xf32, #tpu.memory_space<vmem>>, vector<16x32xf32>
    %cst = arith.constant dense<0.000000e+00> : vector<16xf32>
    %1 = vector.multi_reduction <add>, %0, %cst [1] : vector<16x32xf32> to vector<16xf32>
    %2 = vector.shape_cast %1 : vector<16xf32> to vector<16x1xf32>
    %cst_1 = arith.constant 3.200000e+01 : f32
    %3 = vector.broadcast %cst_1 : f32 to vector<16x1xf32>
    %4 = arith.divf %2, %3 : vector<16x1xf32>
    %5 = vector.broadcast %4 : vector<16x1xf32> to vector<16x32xf32>
    %6 = arith.subf %0, %5 : vector<16x32xf32>
    %7 = arith.mulf %6, %6 : vector<16x32xf32>
    %cst_2 = arith.constant dense<0.000000e+00> : vector<16xf32>
    %8 = vector.multi_reduction <add>, %7, %cst_2 [1] : vector<16x32xf32> to vector<16xf32>
    %9 = vector.shape_cast %8 : vector<16xf32> to vector<16x1xf32>
    %cst_3 = arith.constant 3.200000e+01 : f32
    %10 = vector.broadcast %cst_3 : f32 to vector<16x1xf32>
    %11 = arith.divf %9, %10 : vector<16x1xf32>
    %12 = vector.broadcast %4 : vector<16x1xf32> to vector<16x32xf32>
    %13 = arith.subf %0, %12 : vector<16x32xf32>
    %cst_4 = arith.constant 9.99999974E-6 : f32
    %14 = vector.broadcast %cst_4 : f32 to vector<16x1xf32>
    %15 = arith.addf %11, %14 : vector<16x1xf32>
    %16 = math.rsqrt %15 : vector<16x1xf32>
    %17 = vector.broadcast %16 : vector<16x1xf32> to vector<16x32xf32>
    %18 = arith.mulf %13, %17 : vector<16x32xf32>
    %c0_5 = arith.constant 0 : index
    %c0_6 = arith.constant 0 : index
    %19 = vector.load %arg2[%c0_5, %c0_6] : memref<1x32xf32, #tpu.memory_space<vmem>>, vector<1x32xf32>
    %20 = vector.broadcast %19 : vector<1x32xf32> to vector<16x32xf32>
    %21 = arith.mulf %18, %20 : vector<16x32xf32>
    %c0_7 = arith.constant 0 : index
    %c0_8 = arith.constant 0 : index
    %22 = vector.load %arg3[%c0_7, %c0_8] : memref<1x32xf32, #tpu.memory_space<vmem>>, vector<1x32xf32>
    %23 = vector.broadcast %22 : vector<1x32xf32> to vector<16x32xf32>
    %24 = arith.addf %21, %23 : vector<16x32xf32>
    %c0_9 = arith.constant 0 : index
    %c0_10 = arith.constant 0 : index
    %25 = vector.load %arg4[%c0_9, %c0_10] : memref<32x32xf32, #tpu.memory_space<vmem>>, vector<32x32xf32>
    %cst_11 = arith.constant dense<0.000000e+00> : vector<16x32xf32>
    %26 = tpu.matmul %24, %25, %cst_11 {dimension_numbers = #tpu.dot_dimension_numbers<[1], [0], [0], [1], [0, 0, 1, 1], [], []>} : vector<16x32xf32>, vector<32x32xf32>, vector<16x32xf32> -> vector<16x32xf32>
    %c0_12 = arith.constant 0 : index
    %c0_13 = arith.constant 0 : index
    %27 = vector.load %arg5[%c0_12, %c0_13] : memref<1x32xf32, #tpu.memory_space<vmem>>, vector<1x32xf32>
    %28 = vector.broadcast %27 : vector<1x32xf32> to vector<16x32xf32>
    %29 = arith.addf %26, %28 : vector<16x32xf32>
    %c0_14 = arith.constant 0 : index
    %c0_15 = arith.constant 0 : index
    %30 = vector.load %arg6[%c0_14, %c0_15] : memref<16x32xf32, #tpu.memory_space<vmem>>, vector<16x32xf32>
    tpu.vector_store %arg6[%c0_14, %c0_15], %29 {strides = array<i32>} : memref<16x32xf32, #tpu.memory_space<vmem>>, vector<16x32xf32>,
    return
  }
  func.func @transform_0(%arg0: i32) -> (i32, i32) {
    %c0_i32 = arith.constant 0 : i32
    %c0_i32_0 = arith.constant 0 : i32
    return %arg0, %c0_i32 : i32, i32
  }
  func.func @transform_1(%arg0: i32) -> (i32, i32) {
    %c0_i32 = arith.constant 0 : i32
    %c0_i32_0 = arith.constant 0 : i32
    %c0_i32_1 = arith.constant 0 : i32
    return %c0_i32, %c0_i32_0 : i32, i32
  }
  func.func @transform_2(%arg0: i32) -> (i32, i32) {
    %c0_i32 = arith.constant 0 : i32
    %c0_i32_0 = arith.constant 0 : i32
    %c0_i32_1 = arith.constant 0 : i32
    return %c0_i32, %c0_i32_0 : i32, i32
  }
  func.func @transform_3(%arg0: i32) -> (i32, i32) {
    %c0_i32 = arith.constant 0 : i32
    %c0_i32_0 = arith.constant 0 : i32
    %c0_i32_1 = arith.constant 0 : i32
    return %c0_i32, %c0_i32_0 : i32, i32
  }
  func.func @transform_4(%arg0: i32) -> (i32, i32) {
    %c0_i32 = arith.constant 0 : i32
    %c0_i32_0 = arith.constant 0 : i32
    %c0_i32_1 = arith.constant 0 : i32
    return %c0_i32, %c0_i32_0 : i32, i32
  }
  func.func @transform_5(%arg0: i32) -> (i32, i32) {
    %c0_i32 = arith.constant 0 : i32
    %c0_i32_0 = arith.constant 0 : i32
    return %arg0, %c0_i32 : i32, i32
  }
}

</mosaic_0001>

<llo_original>
// kernel: tpu_custom_call.1
$region0: #{tpu_custom_call.1}
  #allocation0 [shape = 'u32[]', space=smem, size = 0x4, offset = 0x4, fixed_abs, tag = 'smem constant byte address 0x4 - core index']
  #allocation1 [shape = 'u32[144,128]{1,0:T(1,128)}', space=vmem, size = 0x12000, scoped, tag = 'internal scratch']
  %s0 = inlined_call_operand.hbm [shape: f32[16,32], index: 0, kind: input, shape index: {}]
  %s1 = inlined_call_operand.vmem [shape: f32[1,32], index: 1, kind: input, shape index: {}]
  %s2 = inlined_call_operand.vmem [shape: f32[1,32], index: 2, kind: input, shape index: {}]
  %s3 = inlined_call_operand.hbm [shape: f32[32,32], index: 3, kind: input, shape index: {}]
  %s4 = inlined_call_operand.vmem [shape: f32[1,32], index: 4, kind: input, shape index: {}]
  %s5 = inlined_call_operand.hbm [shape: f32[16,32], index: 5, kind: output, shape index: {}]
  %s6 = sld [smem:[#allocation0]]
  $region38: #{tpu_custom_call.1} parent=0
    _
  %s8 = ssub.s32 1, %s6
  %s9 = scalar_select 0, %s8, %s6
  $region1: #{tpu_custom_call.1} parent=0
    #allocation2 [shape = 'u8[8192]{0}', space=vmem, size = 0x2000, scoped, tag = 'input window, operand 0, single buffered']
    #allocation3 [shape = 's32[1]{0}', space=sflag, size = 0x4, scoped, tag = 'scoped memory for tpu_custom_call.1']
    #allocation4 [shape = 's32[1]{0}', space=sflag, size = 0x4, scoped, tag = 'scoped memory for tpu_custom_call.1']
    #allocation5 [shape = 'u8[16384]{0}', space=vmem, size = 0x4000, scoped, tag = 'input window, operand 3, single buffered']
    #allocation6 [shape = 's32[1]{0}', space=sflag, size = 0x4, scoped, tag = 'scoped memory for tpu_custom_call.1']
    #allocation7 [shape = 'u8[8192]{0}', space=vmem, size = 0x2000, scoped, tag = 'output window, operand 0, single buffered']
    %10 = vsyncpa [#allocation3], 0
    %11 = vsyncpa [#allocation6], 0
    %12 = vsyncpa [#allocation4], 0
    // Predicated region
    $region2: #{tpu_custom_call.1} parent=1 // pred_check
      _
    $region3: #{tpu_custom_call.1} parent=1 // pred_check_branch
      %14 = sbr.rel (0) target = $region5
    $region4: #{tpu_custom_call.1} parent=1 // pred_region
      %s16 = ssub.s32 256, 256
      %17 = vsyncadd [#allocation3], %s16
      %s18 = sshll.u32 [#allocation2], 4
      %s19 = int_to_ptr.vmem [resolvable:$true] %s18
      %24 = dma.hbm_to_vmem [thread:$0]  %s0, 256, %s19, [#allocation3], 128, 128, 8
    $region5: #{tpu_custom_call.1} parent=1 // pred_fallthru
      _
    // Predicated region
    $region6: #{tpu_custom_call.1} parent=1 // pred_check
      _
    $region7: #{tpu_custom_call.1} parent=1 // pred_check_branch
      %26 = sbr.rel (0) target = $region9
    $region8: #{tpu_custom_call.1} parent=1 // pred_region
      _
    $region9: #{tpu_custom_call.1} parent=1 // pred_fallthru
      _
    // Predicated region
    $region10: #{tpu_custom_call.1} parent=1 // pred_check
      _
    $region11: #{tpu_custom_call.1} parent=1 // pred_check_branch
      %28 = sbr.rel (0) target = $region13
    $region12: #{tpu_custom_call.1} parent=1 // pred_region
      _
    $region13: #{tpu_custom_call.1} parent=1 // pred_fallthru
      _
    // Predicated region
    $region14: #{tpu_custom_call.1} parent=1 // pred_check
      _
    $region15: #{tpu_custom_call.1} parent=1 // pred_check_branch
      %30 = sbr.rel (0) target = $region17
    $region16: #{tpu_custom_call.1} parent=1 // pred_region
      %s32 = ssub.s32 512, 512
      %33 = vsyncadd [#allocation6], %s32
      %s34 = sshll.u32 [#allocation5], 4
      %s35 = int_to_ptr.vmem [resolvable:$true] %s34
      %40 = dma.hbm_to_vmem [thread:$0]  %s3, 512, %s35, [#allocation6], 128, 128, 8
    $region17: #{tpu_custom_call.1} parent=1 // pred_fallthru
      _
    // Predicated region
    $region18: #{tpu_custom_call.1} parent=1 // pred_check
      _
    $region19: #{tpu_custom_call.1} parent=1 // pred_check_branch
      %42 = sbr.rel (0) target = $region21
    $region20: #{tpu_custom_call.1} parent=1 // pred_region
      _
    $region21: #{tpu_custom_call.1} parent=1 // pred_fallthru
      _
    // Predicated region
    $region22: #{tpu_custom_call.1} parent=1 // pred_check
      _
    $region23: #{tpu_custom_call.1} parent=1 // pred_check_branch
      %44 = sbr.rel (0) target = $region25
    $region24: #{tpu_custom_call.1} parent=1 // pred_region
      %45 = dma.done [#allocation3], 256
    $region25: #{tpu_custom_call.1} parent=1 // pred_fallthru
      _
    // Predicated region
    $region26: #{tpu_custom_call.1} parent=1 // pred_check
      _
    $region27: #{tpu_custom_call.1} parent=1 // pred_check_branch
      %47 = sbr.rel (0) target = $region29
    $region28: #{tpu_custom_call.1} parent=1 // pred_region
      %48 = dma.done [#allocation6], 512
    $region29: #{tpu_custom_call.1} parent=1 // pred_fallthru
      _
    %v49 = vld [vmem:[#allocation2] sm:$0xff]
    %v50 = vld [vmem:[#allocation2 + $0x8] sm:$0xff]
    %vm51 = vcmask 261120
    %v52 = vsel %vm51, %v49, 0.0
    %53 = vadd.xlane.f32.xlu0 %v52
    %v54 = vpop.xlane.xlu0 %53
    %v55 = vsel %vm51, %v50, 0.0
    %56 = vadd.xlane.f32.xlu0 %v55
    %v57 = vpop.xlane.xlu0 %56
    %v58 = vrcp.pop 32.0
    %v59 = vmul.f32 %v54, %v58
    %v60 = vmul.f32 %v57, %v58
    %v61 = vsub.f32 %v49, %v59
    %v62 = vsub.f32 %v50, %v60
    %v63 = vmul.f32 %v61, %v61
    %v64 = vmul.f32 %v62, %v62
    %v65 = vsel %vm51, %v63, 0.0
    %66 = vadd.xlane.f32.xlu0 %v65
    %v67 = vpop.xlane.xlu0 %66
    %v68 = vsel %vm51, %v64, 0.0
    %69 = vadd.xlane.f32.xlu0 %v68
    %v70 = vpop.xlane.xlu0 %69
    %v71 = vmul.f32 %v67, %v58
    %v72 = vmul.f32 %v70, %v58
    %v73 = vadd.f32 %v71, 1e-05
    %v74 = vadd.f32 %v72, 1e-05
    %v75 = vrsqrt.pop %v73
    %v76 = vrsqrt.pop %v74
    %v77 = vmul.f32 %v61, %v75
    %v78 = vmul.f32 %v62, %v76
    %v79 = vld [vmem:[%s1] sm:$0x1]
    %v81 = vlaneseq
    %v82 = vshrl.u32 %v81, 7
    %v83 = vsub.s32 0, %v82
    %v84 = vrot.slane %v79, %v83
    %v86 = vmul.f32 %v77, %v84
    %v87 = vmul.f32 %v78, %v84
    %v88 = vld [vmem:[%s2] sm:$0x1]
    %v90 = vlaneseq
    %v91 = vshrl.u32 %v90, 7
    %v92 = vsub.s32 0, %v91
    %v93 = vrot.slane %v88, %v92
    %v95 = vadd.f32 %v86, %v93
    %v96 = vadd.f32 %v87, %v93
    %v97 = vld [vmem:[#allocation5] sm:$0xff]
    %v98 = vld [vmem:[#allocation5 + $0x8] sm:$0xff]
    %v99 = vld [vmem:[#allocation5 + $0x10] sm:$0xff]
    %v100 = vld [vmem:[#allocation5 + $0x18] sm:$0xff]
    %v101 = vld [vmem:[%s4] sm:$0x1]
    %v103 = vlaneseq
    %v104 = vshrl.u32 %v103, 7
    %v105 = vsub.s32 0, %v104
    %v106 = vrot.slane %v101, %v105
    %v109 = vsel %vm51, %v95, 0
    %v112 = vsel %vm51, %v96, 0
    %114 = vmatprep.subr.mxu0 0.0
    %115 = vmatpush1.msra.mxu0 0.0
    %116 = vmatprep.subr.mxu0 0.0
    %117 = vmatpush1.msra.mxu0 0.0
    %118 = vmatprep.subr.mxu0 0.0
    %119 = vmatpush1.msra.mxu0 0.0
    %120 = vmatprep.subr.mxu0 0.0
    %121 = vmatpush1.msra.mxu0 0.0
    %122 = vmatprep.subr.mxu0 0.0
    %123 = vmatpush1.msra.mxu0 0.0
    %124 = vmatprep.subr.mxu0 0.0
    %125 = vmatpush1.msra.mxu0 0.0
    %126 = vmatprep.subr.mxu0 0.0
    %127 = vmatpush1.msra.mxu0 0.0
    %128 = vmatprep.subr.mxu0 0.0
    %129 = vmatpush1.msra.mxu0 0.0
    %130 = vmatprep.subr.mxu0 0.0
    %131 = vmatpush1.msra.mxu0 0.0
    %132 = vmatprep.subr.mxu0 0.0
    %133 = vmatpush1.msra.mxu0 0.0
    %134 = vmatprep.subr.mxu0 0.0
    %135 = vmatpush1.msra.mxu0 0.0
    %136 = vmatprep.subr.mxu0 0.0
    %137 = vmatpush1.msra.mxu0 0.0
    %138 = vmatprep.subr.mxu0 0.0
    %139 = vmatpush1.msra.mxu0 %v100
    %140 = vmatprep.subr.mxu0 0.0
    %141 = vmatpush1.msra.mxu0 %v99
    %142 = vmatprep.subr.mxu0 0.0
    %143 = vmatpush1.msra.mxu0 %v98
    %144 = vmatprep.subr.mxu0 0.0
    %145 = vmatpush1.msra.mxu0 %v97
    %146 = vmatprep.subr.mxu0 0.0
    %147 = vmatpush2.msra.mxu0 0.0
    %148 = vmatprep.subr.mxu0 0.0
    %149 = vmatpush2.msra.mxu0 0.0
    %150 = vmatprep.subr.mxu0 0.0
    %151 = vmatpush2.msra.mxu0 0.0
    %152 = vmatprep.subr.mxu0 0.0
    %153 = vmatpush2.msra.mxu0 0.0
    %154 = vmatprep.subr.mxu0 0.0
    %155 = vmatpush2.msra.mxu0 0.0
    %156 = vmatprep.subr.mxu0 0.0
    %157 = vmatpush2.msra.mxu0 0.0
    %158 = vmatprep.subr.mxu0 0.0
    %159 = vmatpush2.msra.mxu0 0.0
    %160 = vmatprep.subr.mxu0 0.0
    %161 = vmatpush2.msra.mxu0 0.0
    %162 = vmatprep.subr.mxu0 0.0
    %163 = vmatpush2.msra.mxu0 0.0
    %164 = vmatprep.subr.mxu0 0.0
    %165 = vmatpush2.msra.mxu0 0.0
    %166 = vmatprep.subr.mxu0 0.0
    %167 = vmatpush2.msra.mxu0 0.0
    %168 = vmatprep.subr.mxu0 0.0
    %169 = vmatpush2.msra.mxu0 0.0
    %170 = vmatprep.subr.mxu0 0.0
    %171 = vmatpush2.msra.mxu0 0.0
    %172 = vmatprep.subr.mxu0 0.0
    %173 = vmatpush2.msra.mxu0 0.0
    %174 = vmatprep.subr.mxu0 0.0
    %175 = vmatpush2.msra.mxu0 0.0
    %176 = vmatprep.subr.mxu0 0.0
    %177 = vmatpush2.msra.mxu0 0.0
    %178 = vmatprep.mubr.f32.mxu0 0.0
    %179 = vmatmul.mubr.f32.gmra.mxu0 %v109
    %v180 = vpop.f32.mrf.mxu0
    %v181 = vadd.f32 %v106, %v180
    %v182 = vpop.f32.mrf.mxu0
    %183 = vmatprep.mubr.f32.mxu0 0.0
    %184 = vmatmul.mubr.f32.gmra.mxu0 %v112
    %v185 = vpop.f32.mrf.mxu0
    %v186 = vadd.f32 %v106, %v185
    %v187 = vpop.f32.mrf.mxu0
    %188 = vdwg.mxu0
    %189 = vst.msk [vmem:[#allocation7] sm:$0xff] %vm51, %v181
    %190 = vst.msk [vmem:[#allocation7 + $0x8] sm:$0xff] %vm51, %v186
    // Predicated region
    $region30: #{tpu_custom_call.1} parent=1 // pred_check
      _
    $region31: #{tpu_custom_call.1} parent=1 // pred_check_branch
      %192 = sbr.rel (0) target = $region33
    $region32: #{tpu_custom_call.1} parent=1 // pred_region
      %s194 = ssub.s32 256, 256
      %195 = vsyncadd [#allocation4], %s194
      %s196 = sshll.u32 [#allocation7], 4
      %s197 = int_to_ptr.vmem [resolvable:$true] %s196
      %202 = dma.vmem_to_hbm [thread:$0]  %s197, 256, %s5, [#allocation4], 128, 128, 8
    $region33: #{tpu_custom_call.1} parent=1 // pred_fallthru
      _
    // Predicated region
    $region34: #{tpu_custom_call.1} parent=1 // pred_check
      _
    $region35: #{tpu_custom_call.1} parent=1 // pred_check_branch
      %204 = sbr.rel (0) target = $region37
    $region36: #{tpu_custom_call.1} parent=1 // pred_region
      %205 = dma.done [#allocation4], 256
    $region37: #{tpu_custom_call.1} parent=1 // pred_fallthru
      _
    %206 = vsyncpa [#allocation3], 1
    %207 = vsyncpa [#allocation6], 1
    %208 = vsyncpa [#allocation4], 1

</llo_original>
